<compile_context>
chip_gen: v7x
topology: tpu7x:2x2x1
jax: 0.10.0
libtpu: 0.0.40
codegen_flags: <defaults>
</compile_context>

<pallas_src>
import functools

import jax
import jax.numpy as jnp
from jax import lax
from jax.experimental import pallas as pl
from jax.experimental.pallas import tpu as pltpu

_LANES = 128
_SUBLANES = 8


def _multiple_loss_kernel(p_ref, t_ref, sse_ref, sae_ref, acc_sq, acc_ab,
                          *, rows, tile_rows, bpc):
    c = pl.program_id(0)          # core / parallel slice
    i = pl.program_id(1)          # reduction step within this core's slice

    @pl.when(i == 0)
    def _init():
        acc_sq[...] = jnp.zeros_like(acc_sq)
        acc_ab[...] = jnp.zeros_like(acc_ab)

    row_start = (c * bpc + i) * tile_rows
    is_full = (row_start + tile_rows) <= rows                       # fast path
    is_tail = jnp.logical_and(row_start < rows, jnp.logical_not(is_full))
    # row_start >= rows (clamped fully-OOB block): both branches skipped.

    def _accumulate(d):
        # Fold sublane strips into one (8,128) f32 accumulator per loss.
        # Pure VPU adds (no XLU); lane/sublane collapse deferred to epilogue.
        acc_sq[...] += jnp.sum((d * d).reshape(-1, _SUBLANES, _LANES), axis=0)
        acc_ab[...] += jnp.sum(jnp.abs(d).reshape(-1, _SUBLANES, _LANES),
                               axis=0)

    @pl.when(is_full)
    def _fast():
        d = p_ref[...].astype(jnp.float32) - t_ref[...].astype(jnp.float32)
        _accumulate(d)

    @pl.when(is_tail)
    def _tail():
        # Only the single ragged block pays for the iota/compare/select,
        # and the mask is applied once on d.
        local_row = lax.broadcasted_iota(jnp.int32, (tile_rows, _LANES), 0)
        valid = (row_start + local_row) < rows
        d = jnp.where(
            valid,
            p_ref[...].astype(jnp.float32) - t_ref[...].astype(jnp.float32),
            0.0)
        _accumulate(d)

    @pl.when(i == pl.num_programs(1) - 1)
    def _epilogue():
        # Collapse the sublane axis once per core; lanes collapsed in wrapper.
        sse_ref[0] = jnp.sum(acc_sq[...], axis=0, keepdims=True)
        sae_ref[0] = jnp.sum(acc_ab[...], axis=0, keepdims=True)


def _default_ncores():
    # v7x has 2 TensorCores per chip; v5e/v6e have 1.
    try:
        kind = jax.devices()[0].device_kind.lower()
    except Exception:
        return 1
    return 2 if ("v7" in kind or "7x" in kind) else 1


def multiple_loss(predict, target, weights=(0.5, 0.5),
                  max_tile_rows=4096, ncores=None):
    """Weighted sum of mean MSE and mean L1 losses over NCHW inputs (scalar)."""
    assert predict.shape == target.shape
    numel = int(predict.size)
    if ncores is None:
        ncores = _default_ncores()

    # Lane-dense flattening.  Zero-pad BOTH operands identically so padding
    # contributes exactly 0 to both error sums; the mean divides by `numel`.
    p_flat = predict.reshape(-1)
    t_flat = target.reshape(-1)
    padded = ((numel + _LANES - 1) // _LANES) * _LANES
    if padded != numel:
        p_flat = jnp.pad(p_flat, (0, padded - numel))
        t_flat = jnp.pad(t_flat, (0, padded - numel))
    rows = padded // _LANES
    p2d = p_flat.reshape(rows, _LANES)
    t2d = t_flat.reshape(rows, _LANES)

    # ---- tiling -------------------------------------------------------------
    def _round_up(x, m):
        return ((x + m - 1) // m) * m

    per_core_rows = pl.cdiv(rows, ncores)
    # multiple of 16 rows: safe sublane packing for both f32 (8) and bf16 (16)
    tile_rows = max(16, min(max_tile_rows, _round_up(per_core_rows, 16)))
    blocks_total = pl.cdiv(rows, tile_rows)
    bpc = pl.cdiv(blocks_total, ncores)        # blocks per core
    max_block = max(blocks_total - 1, 0)
    grid = (ncores, bpc)

    def in_map(c, i):
        # Clamp fully-out-of-bounds block indices; in-kernel skip makes their
        # contribution zero (DMA of the clamped block is the only waste).
        return (jnp.minimum(c * bpc + i, max_block), 0)

    kernel = functools.partial(
        _multiple_loss_kernel, rows=rows, tile_rows=tile_rows, bpc=bpc)

    itemsize = jnp.dtype(predict.dtype).itemsize
    # ~6 flops/element: sub, square, abs, two accumulate adds (+ reductions).
    cost = pl.CostEstimate(
        flops=6 * numel,
        transcendentals=0,
        bytes_accessed=2 * padded * itemsize + 2 * ncores * _LANES * 4,
    )

    # Explicit VMEM budget: 2 inputs x 2 pipeline buffers x tile bytes plus
    # in-kernel f32 temporaries and headroom; clamped to stay comfortably under
    # v7x's 64 MiB physical VMEM (also raises v5e's 16 MiB scoped default).
    block_bytes = tile_rows * _LANES * itemsize
    temp_bytes = 6 * tile_rows * _LANES * 4
    vmem_limit = int(min(max(4 * block_bytes + temp_bytes + (2 << 20),
                             32 << 20),
                         48 << 20))

    if ncores > 1:
        # Guarantee the 2-TensorCore split on v7x (plain "parallel" may not).
        dim_sem = (getattr(pltpu, "CORE_PARALLEL", pltpu.PARALLEL),
                   pltpu.ARBITRARY)
    else:
        dim_sem = ("arbitrary", "arbitrary")

    sse_parts, sae_parts = pl.pallas_call(
        kernel,
        out_shape=(
            jax.ShapeDtypeStruct((ncores, 1, _LANES), jnp.float32),
            jax.ShapeDtypeStruct((ncores, 1, _LANES), jnp.float32),
        ),
        grid_spec=pltpu.PrefetchScalarGridSpec(
            num_scalar_prefetch=0,
            grid=grid,
            in_specs=[
                pl.BlockSpec((tile_rows, _LANES), in_map),
                pl.BlockSpec((tile_rows, _LANES), in_map),
            ],
            out_specs=[
                pl.BlockSpec((1, 1, _LANES), lambda c, i: (c, 0, 0)),
                pl.BlockSpec((1, 1, _LANES), lambda c, i: (c, 0, 0)),
            ],
            scratch_shapes=[
                pltpu.VMEM((_SUBLANES, _LANES), jnp.float32),
                pltpu.VMEM((_SUBLANES, _LANES), jnp.float32),
            ],
        ),
        compiler_params=pltpu.CompilerParams(
            dimension_semantics=dim_sem,
            vmem_limit_bytes=vmem_limit,
        ),
        cost_estimate=cost,
    )(p2d, t2d)

    sse = jnp.sum(sse_parts)   # total sum of squared error
    sae = jnp.sum(sae_parts)   # total sum of absolute error
    w0 = jnp.float32(weights[0])
    w1 = jnp.float32(weights[1])
    return (w0 * sse + w1 * sae) / jnp.float32(numel)


def _reference(predict, target, weights=(0.5, 0.5)):
    d = predict.astype(jnp.float32) - target.astype(jnp.float32)
    mse = jnp.mean(d * d)
    mae = jnp.mean(jnp.abs(d))
    return weights[0] * mse + weights[1] * mae


if __name__ == "__main__":
    key = jax.random.PRNGKey(0)
    k1, k2 = jax.random.split(key)
    # NCHW, small shapes
    predict = jax.random.normal(k1, (2, 4, 16, 16), dtype=jnp.float32)
    target = jax.random.normal(k2, (2, 4, 16, 16), dtype=jnp.float32)

    loss = multiple_loss(predict, target)
    jax.block_until_ready(loss)

    ref = _reference(predict, target)
    if not jnp.allclose(loss, ref, rtol=1e-5, atol=1e-6):
        raise AssertionError(f"mismatch: kernel={loss}, ref={ref}")

    # TODO(synk): arbitrary user-supplied sub-loss modules (nn.ModuleList) are
    # not generically translatable; this implements the MSE+L1 instantiation.
    print("KERNEL_OK")
</pallas_src>

<mosaic_0001>
module attributes {stable_mosaic.version = 11 : i64} {
  func.func @_multiple_loss_kernel(%arg0: i32, %arg1: i32, %arg2: memref<16x128xf32, #tpu.memory_space<vmem>>, %arg3: memref<16x128xf32, #tpu.memory_space<vmem>>, %arg4: memref<1x1x128xf32, #tpu.memory_space<vmem>>, %arg5: memref<1x1x128xf32, #tpu.memory_space<vmem>>, %arg6: memref<8x128xf32, #tpu.memory_space<vmem>>, %arg7: memref<8x128xf32, #tpu.memory_space<vmem>>) attributes {dimension_semantics = [#tpu.dimension_semantics<arbitrary>, #tpu.dimension_semantics<arbitrary>], iteration_bounds = array<i64: 1, 1>, scalar_prefetch = 0 : i64, scratch_operands = 2 : i64, tpu.core_type = #tpu.core_type<tc>, window_params = [{transform_indices = @transform_0, window_bounds = array<i64: 16, 128>}, {transform_indices = @transform_1, window_bounds = array<i64: 16, 128>}, {transform_indices = @transform_2, window_bounds = array<i64: 1, 1, 128>}, {transform_indices = @transform_3, window_bounds = array<i64: 1, 1, 128>}]} {
    %c0_i32 = arith.constant 0 : i32
    %0 = arith.cmpi eq, %arg1, %c0_i32 : i32
    %1 = arith.extui %0 : i1 to i32
    %c0_i32_0 = arith.constant 0 : i32
    %2 = arith.cmpi ne, %1, %c0_i32_0 : i32
    scf.if %2 {
      %cst = arith.constant 0.000000e+00 : f32
      %18 = vector.broadcast %cst : f32 to vector<8x128xf32>
      %c0 = arith.constant 0 : index
      %c0_8 = arith.constant 0 : index
      %19 = vector.load %arg6[%c0, %c0_8] : memref<8x128xf32, #tpu.memory_space<vmem>>, vector<8x128xf32>
      tpu.vector_store %arg6[%c0, %c0_8], %18 {strides = array<i32>} : memref<8x128xf32, #tpu.memory_space<vmem>>, vector<8x128xf32>,
      %cst_9 = arith.constant 0.000000e+00 : f32
      %20 = vector.broadcast %cst_9 : f32 to vector<8x128xf32>
      %c0_10 = arith.constant 0 : index
      %c0_11 = arith.constant 0 : index
      %21 = vector.load %arg7[%c0_10, %c0_11] : memref<8x128xf32, #tpu.memory_space<vmem>>, vector<8x128xf32>
      tpu.vector_store %arg7[%c0_10, %c0_11], %20 {strides = array<i32>} : memref<8x128xf32, #tpu.memory_space<vmem>>, vector<8x128xf32>,
    } else {
    }
    %c1_i32 = arith.constant 1 : i32
    %3 = arith.muli %arg0, %c1_i32 : i32
    %4 = arith.addi %3, %arg1 : i32
    %c16_i32 = arith.constant 16 : i32
    %5 = arith.muli %4, %c16_i32 : i32
    %c16_i32_1 = arith.constant 16 : i32
    %6 = arith.addi %5, %c16_i32_1 : i32
    %c16_i32_2 = arith.constant 16 : i32
    %7 = arith.cmpi sle, %6, %c16_i32_2 : i32
    %c16_i32_3 = arith.constant 16 : i32
    %8 = arith.cmpi slt, %5, %c16_i32_3 : i32
    %true = arith.constant true
    %9 = arith.xori %7, %true : i1
    %10 = arith.andi %8, %9 : i1
    %11 = arith.extui %7 : i1 to i32
    %c0_i32_4 = arith.constant 0 : i32
    %12 = arith.cmpi ne, %11, %c0_i32_4 : i32
    scf.if %12 {
      %c0 = arith.constant 0 : index
      %c0_8 = arith.constant 0 : index
      %18 = vector.load %arg2[%c0, %c0_8] : memref<16x128xf32, #tpu.memory_space<vmem>>, vector<16x128xf32>
      %c0_9 = arith.constant 0 : index
      %c0_10 = arith.constant 0 : index
      %19 = vector.load %arg3[%c0_9, %c0_10] : memref<16x128xf32, #tpu.memory_space<vmem>>, vector<16x128xf32>
      %20 = arith.subf %18, %19 : vector<16x128xf32>
      %c0_11 = arith.constant 0 : index
      %c0_12 = arith.constant 0 : index
      %21 = vector.load %arg6[%c0_11, %c0_12] : memref<8x128xf32, #tpu.memory_space<vmem>>, vector<8x128xf32>
      %22 = arith.mulf %20, %20 : vector<16x128xf32>
      %23 = vector.shape_cast %22 : vector<16x128xf32> to vector<2x8x128xf32>
      %cst = arith.constant dense<0.000000e+00> : vector<8x128xf32>
      %24 = vector.multi_reduction <add>, %23, %cst [0] : vector<2x8x128xf32> to vector<8x128xf32>
      %25 = arith.addf %21, %24 : vector<8x128xf32>
      %c0_13 = arith.constant 0 : index
      %c0_14 = arith.constant 0 : index
      %26 = vector.load %arg6[%c0_13, %c0_14] : memref<8x128xf32, #tpu.memory_space<vmem>>, vector<8x128xf32>
      tpu.vector_store %arg6[%c0_13, %c0_14], %25 {strides = array<i32>} : memref<8x128xf32, #tpu.memory_space<vmem>>, vector<8x128xf32>,
      %c0_15 = arith.constant 0 : index
      %c0_16 = arith.constant 0 : index
      %27 = vector.load %arg7[%c0_15, %c0_16] : memref<8x128xf32, #tpu.memory_space<vmem>>, vector<8x128xf32>
      %28 = math.absf %20 : vector<16x128xf32>
      %29 = vector.shape_cast %28 : vector<16x128xf32> to vector<2x8x128xf32>
      %cst_17 = arith.constant dense<0.000000e+00> : vector<8x128xf32>
      %30 = vector.multi_reduction <add>, %29, %cst_17 [0] : vector<2x8x128xf32> to vector<8x128xf32>
      %31 = arith.addf %27, %30 : vector<8x128xf32>
      %c0_18 = arith.constant 0 : index
      %c0_19 = arith.constant 0 : index
      %32 = vector.load %arg7[%c0_18, %c0_19] : memref<8x128xf32, #tpu.memory_space<vmem>>, vector<8x128xf32>
      tpu.vector_store %arg7[%c0_18, %c0_19], %31 {strides = array<i32>} : memref<8x128xf32, #tpu.memory_space<vmem>>, vector<8x128xf32>,
    } else {
    }
    %13 = arith.extui %10 : i1 to i32
    %c0_i32_5 = arith.constant 0 : i32
    %14 = arith.cmpi ne, %13, %c0_i32_5 : i32
    scf.if %14 {
      %18 = tpu.iota {dimensions = array<i32: 0>} : vector<16x128xi32>
      %19 = vector.broadcast %5 : i32 to vector<16x128xi32>
      %20 = arith.addi %19, %18 : vector<16x128xi32>
      %c16_i32_8 = arith.constant 16 : i32
      %21 = vector.broadcast %c16_i32_8 : i32 to vector<16x128xi32>
      %22 = arith.cmpi slt, %20, %21 : vector<16x128xi32>
      %c0 = arith.constant 0 : index
      %c0_9 = arith.constant 0 : index
      %23 = vector.load %arg2[%c0, %c0_9] : memref<16x128xf32, #tpu.memory_space<vmem>>, vector<16x128xf32>
      %c0_10 = arith.constant 0 : index
      %c0_11 = arith.constant 0 : index
      %24 = vector.load %arg3[%c0_10, %c0_11] : memref<16x128xf32, #tpu.memory_space<vmem>>, vector<16x128xf32>
      %25 = arith.subf %23, %24 : vector<16x128xf32>
      %cst = arith.constant 0.000000e+00 : f32
      %26 = vector.broadcast %cst : f32 to vector<16x128xf32>
      %27 = arith.select %22, %25, %26 : vector<16x128xi1>, vector<16x128xf32>
      %c0_12 = arith.constant 0 : index
      %c0_13 = arith.constant 0 : index
      %28 = vector.load %arg6[%c0_12, %c0_13] : memref<8x128xf32, #tpu.memory_space<vmem>>, vector<8x128xf32>
      %29 = arith.mulf %27, %27 : vector<16x128xf32>
      %30 = vector.shape_cast %29 : vector<16x128xf32> to vector<2x8x128xf32>
      %cst_14 = arith.constant dense<0.000000e+00> : vector<8x128xf32>
      %31 = vector.multi_reduction <add>, %30, %cst_14 [0] : vector<2x8x128xf32> to vector<8x128xf32>
      %32 = arith.addf %28, %31 : vector<8x128xf32>
      %c0_15 = arith.constant 0 : index
      %c0_16 = arith.constant 0 : index
      %33 = vector.load %arg6[%c0_15, %c0_16] : memref<8x128xf32, #tpu.memory_space<vmem>>, vector<8x128xf32>
      tpu.vector_store %arg6[%c0_15, %c0_16], %32 {strides = array<i32>} : memref<8x128xf32, #tpu.memory_space<vmem>>, vector<8x128xf32>,
      %c0_17 = arith.constant 0 : index
      %c0_18 = arith.constant 0 : index
      %34 = vector.load %arg7[%c0_17, %c0_18] : memref<8x128xf32, #tpu.memory_space<vmem>>, vector<8x128xf32>
      %35 = math.absf %27 : vector<16x128xf32>
      %36 = vector.shape_cast %35 : vector<16x128xf32> to vector<2x8x128xf32>
      %cst_19 = arith.constant dense<0.000000e+00> : vector<8x128xf32>
      %37 = vector.multi_reduction <add>, %36, %cst_19 [0] : vector<2x8x128xf32> to vector<8x128xf32>
      %38 = arith.addf %34, %37 : vector<8x128xf32>
      %c0_20 = arith.constant 0 : index
      %c0_21 = arith.constant 0 : index
      %39 = vector.load %arg7[%c0_20, %c0_21] : memref<8x128xf32, #tpu.memory_space<vmem>>, vector<8x128xf32>
      tpu.vector_store %arg7[%c0_20, %c0_21], %38 {strides = array<i32>} : memref<8x128xf32, #tpu.memory_space<vmem>>, vector<8x128xf32>,
    } else {
    }
    %c0_i32_6 = arith.constant 0 : i32
    %15 = arith.cmpi eq, %arg1, %c0_i32_6 : i32
    %16 = arith.extui %15 : i1 to i32
    %c0_i32_7 = arith.constant 0 : i32
    %17 = arith.cmpi ne, %16, %c0_i32_7 : i32
    scf.if %17 {
      %c0 = arith.constant 0 : index
      %c0_8 = arith.constant 0 : index
      %18 = vector.load %arg6[%c0, %c0_8] : memref<8x128xf32, #tpu.memory_space<vmem>>, vector<8x128xf32>
      %cst = arith.constant dense<0.000000e+00> : vector<128xf32>
      %19 = vector.multi_reduction <add>, %18, %cst [0] : vector<8x128xf32> to vector<128xf32>
      %20 = vector.shape_cast %19 : vector<128xf32> to vector<1x128xf32>
      %c0_9 = arith.constant 0 : index
      %c0_10 = arith.constant 0 : index
      %c0_11 = arith.constant 0 : index
      %21 = vector.load %arg4[%c0_9, %c0_10, %c0_11] : memref<1x1x128xf32, #tpu.memory_space<vmem>>, vector<1x1x128xf32>
      %22 = vector.shape_cast %21 : vector<1x1x128xf32> to vector<1x128xf32>
      %23 = vector.shape_cast %20 : vector<1x128xf32> to vector<1x1x128xf32>
      tpu.vector_store %arg4[%c0_9, %c0_10, %c0_11], %23 {strides = array<i32>} : memref<1x1x128xf32, #tpu.memory_space<vmem>>, vector<1x1x128xf32>,
      %c0_12 = arith.constant 0 : index
      %c0_13 = arith.constant 0 : index
      %24 = vector.load %arg7[%c0_12, %c0_13] : memref<8x128xf32, #tpu.memory_space<vmem>>, vector<8x128xf32>
      %cst_14 = arith.constant dense<0.000000e+00> : vector<128xf32>
      %25 = vector.multi_reduction <add>, %24, %cst_14 [0] : vector<8x128xf32> to vector<128xf32>
      %26 = vector.shape_cast %25 : vector<128xf32> to vector<1x128xf32>
      %c0_15 = arith.constant 0 : index
      %c0_16 = arith.constant 0 : index
      %c0_17 = arith.constant 0 : index
      %27 = vector.load %arg5[%c0_15, %c0_16, %c0_17] : memref<1x1x128xf32, #tpu.memory_space<vmem>>, vector<1x1x128xf32>
      %28 = vector.shape_cast %27 : vector<1x1x128xf32> to vector<1x128xf32>
      %29 = vector.shape_cast %26 : vector<1x128xf32> to vector<1x1x128xf32>
      tpu.vector_store %arg5[%c0_15, %c0_16, %c0_17], %29 {strides = array<i32>} : memref<1x1x128xf32, #tpu.memory_space<vmem>>, vector<1x1x128xf32>,
    } else {
    }
    return
  }
  func.func @transform_0(%arg0: i32, %arg1: i32) -> (i32, i32) {
    %c1_i32 = arith.constant 1 : i32
    %0 = arith.muli %arg0, %c1_i32 : i32
    %1 = arith.addi %0, %arg1 : i32
    %c0_i32 = arith.constant 0 : i32
    %2 = arith.minsi %1, %c0_i32 : i32
    %c0_i32_0 = arith.constant 0 : i32
    %c0_i32_1 = arith.constant 0 : i32
    return %2, %c0_i32_0 : i32, i32
  }
  func.func @transform_1(%arg0: i32, %arg1: i32) -> (i32, i32) {
    %c1_i32 = arith.constant 1 : i32
    %0 = arith.muli %arg0, %c1_i32 : i32
    %1 = arith.addi %0, %arg1 : i32
    %c0_i32 = arith.constant 0 : i32
    %2 = arith.minsi %1, %c0_i32 : i32
    %c0_i32_0 = arith.constant 0 : i32
    %c0_i32_1 = arith.constant 0 : i32
    return %2, %c0_i32_0 : i32, i32
  }
  func.func @transform_2(%arg0: i32, %arg1: i32) -> (i32, i32, i32) {
    %c0_i32 = arith.constant 0 : i32
    %c0_i32_0 = arith.constant 0 : i32
    %c0_i32_1 = arith.constant 0 : i32
    return %arg0, %c0_i32, %c0_i32_0 : i32, i32, i32
  }
  func.func @transform_3(%arg0: i32, %arg1: i32) -> (i32, i32, i32) {
    %c0_i32 = arith.constant 0 : i32
    %c0_i32_0 = arith.constant 0 : i32
    %c0_i32_1 = arith.constant 0 : i32
    return %arg0, %c0_i32, %c0_i32_0 : i32, i32, i32
  }
}

</mosaic_0001>

<llo_original>
// kernel: tpu_custom_call.1
$region0: #{tpu_custom_call.1}
  #allocation0 [shape = 'u32[]', space=smem, size = 0x4, offset = 0x4, fixed_abs, tag = 'smem constant byte address 0x4 - core index']
  #allocation1 [shape = 'u32[144,128]{1,0:T(1,128)}', space=vmem, size = 0x12000, scoped, tag = 'internal scratch']
  #allocation2 [shape = 'f32[8,128]{1,0:T(8,128)}', space=vmem, size = 0x1000, scoped, tag = 'scratch operand']
  #allocation3 [shape = 'f32[8,128]{1,0:T(8,128)}', space=vmem, size = 0x1000, scoped, tag = 'scratch operand']
  %s0 = inlined_call_operand.hbm [shape: f32[16,128], index: 0, kind: input, shape index: {}]
  %s1 = inlined_call_operand.hbm [shape: f32[16,128], index: 1, kind: input, shape index: {}]
  %s2 = inlined_call_operand.hbm [shape: f32[1,1,128], index: 2, kind: output, shape index: {0}]
  %s3 = inlined_call_operand.hbm [shape: f32[1,1,128], index: 3, kind: output, shape index: {1}]
  %4 = xla_tuple %s2, %s3
  %s5 = sld [smem:[#allocation0]]
  $region50: #{tpu_custom_call.1} parent=0
    _
  %s7 = ssub.s32 1, %s5
  %s8 = scalar_select 0, %s7, %s5
  $region1: #{tpu_custom_call.1} parent=0
    #allocation4 [shape = 'u8[8192]{0}', space=vmem, size = 0x2000, scoped, tag = 'input window, operand 0, single buffered']
    #allocation5 [shape = 's32[1]{0}', space=sflag, size = 0x4, scoped, tag = 'scoped memory for tpu_custom_call.1']
    #allocation6 [shape = 's32[1]{0}', space=sflag, size = 0x4, scoped, tag = 'scoped memory for tpu_custom_call.1']
    #allocation7 [shape = 'u8[8192]{0}', space=vmem, size = 0x2000, scoped, tag = 'input window, operand 1, single buffered']
    #allocation8 [shape = 's32[1]{0}', space=sflag, size = 0x4, scoped, tag = 'scoped memory for tpu_custom_call.1']
    #allocation9 [shape = 'u8[512]{0}', space=vmem, size = 0x400, scoped, tag = 'output window, operand 0, single buffered']
    #allocation10 [shape = 'u8[512]{0}', space=vmem, size = 0x400, scoped, tag = 'output window, operand 1, single buffered']
    #allocation11 [shape = 's32[1]{0}', space=sflag, size = 0x4, scoped, tag = 'scoped memory for tpu_custom_call.1']
    %9 = vsyncpa [#allocation5], 0
    %10 = vsyncpa [#allocation8], 0
    %11 = vsyncpa [#allocation6], 0
    %12 = vsyncpa [#allocation11], 0
    // Predicated region
    $region2: #{tpu_custom_call.1} parent=1 // pred_check
      _
    $region3: #{tpu_custom_call.1} parent=1 // pred_check_branch
      %14 = sbr.rel (0) target = $region5
    $region4: #{tpu_custom_call.1} parent=1 // pred_region
      %s15 = sadd.s32 0, 0
      %p16 = scmp.lt.s32.totalorder %s15, 0
      %s17 = scalar_select %p16, %s15, 0
      %s18 = smul.u32 2, %s17
      %s20 = ssub.s32 256, 256
      %21 = vsyncadd [#allocation5], %s20
      %s22 = smul.addr %s18, 128
      %s23 = scalar_lea.hbm %s0, %s22
      %s24 = sshll.u32 [#allocation4], 4
      %s25 = int_to_ptr.vmem [resolvable:$true] %s24
      %30 = dma.hbm_to_vmem [thread:$0]  %s23, 256, %s25, [#allocation5], 128, 128, 8
    $region5: #{tpu_custom_call.1} parent=1 // pred_fallthru
      _
    // Predicated region
    $region6: #{tpu_custom_call.1} parent=1 // pred_check
      _
    $region7: #{tpu_custom_call.1} parent=1 // pred_check_branch
      %32 = sbr.rel (0) target = $region9
    $region8: #{tpu_custom_call.1} parent=1 // pred_region
      %s33 = sadd.s32 0, 0
      %p34 = scmp.lt.s32.totalorder %s33, 0
      %s35 = scalar_select %p34, %s33, 0
      %s36 = smul.u32 2, %s35
      %s38 = ssub.s32 256, 256
      %39 = vsyncadd [#allocation8], %s38
      %s40 = smul.addr %s36, 128
      %s41 = scalar_lea.hbm %s1, %s40
      %s42 = sshll.u32 [#allocation7], 4
      %s43 = int_to_ptr.vmem [resolvable:$true] %s42
      %48 = dma.hbm_to_vmem [thread:$0]  %s41, 256, %s43, [#allocation8], 128, 128, 8
    $region9: #{tpu_custom_call.1} parent=1 // pred_fallthru
      _
    // Predicated region
    $region10: #{tpu_custom_call.1} parent=1 // pred_check
      _
    $region11: #{tpu_custom_call.1} parent=1 // pred_check_branch
      %50 = sbr.rel (0) target = $region13
    $region12: #{tpu_custom_call.1} parent=1 // pred_region
      %51 = dma.done [#allocation5], 256
    $region13: #{tpu_custom_call.1} parent=1 // pred_fallthru
      _
    // Predicated region
    $region14: #{tpu_custom_call.1} parent=1 // pred_check
      _
    $region15: #{tpu_custom_call.1} parent=1 // pred_check_branch
      %53 = sbr.rel (0) target = $region17
    $region16: #{tpu_custom_call.1} parent=1 // pred_region
      %54 = dma.done [#allocation8], 256
    $region17: #{tpu_custom_call.1} parent=1 // pred_fallthru
      _
    %s55 = sadd.s32 0, 0
    %p56 = scmp.lt.s32.totalorder %s55, 0
    %s57 = scalar_select %p56, %s55, 0
    %s58 = smul.u32 2, %s57
    %s59 = sadd.s32 0, 0
    %p60 = scmp.lt.s32.totalorder %s59, 0
    %s61 = scalar_select %p60, %s59, 0
    %s62 = smul.u32 2, %s61
    %p63 = scmp.eq.s32.totalorder 0, 0
    // Predicated region
    $region18: #{tpu_custom_call.1} parent=1 // pred_check
      %p64 = pneg %p63
    $region19: #{tpu_custom_call.1} parent=1 // pred_check_branch
      %66 = sbr.rel (%p64) target = $region21
    $region20: #{tpu_custom_call.1} parent=1 // pred_region
      %67 = vst [vmem:[#allocation2] sm:$0xff] 0.0
      %68 = vst [vmem:[#allocation3] sm:$0xff] 0.0
    $region21: #{tpu_custom_call.1} parent=1 // pred_fallthru
      _
    %s69 = sadd.s32 0, 0
    %s70 = smul.u32 %s69, 16
    %s71 = sadd.s32 %s70, 16
    %p72 = scmp.le.s32.totalorder %s71, 16
    %p73 = scmp.lt.s32.totalorder %s70, 16
    %p74 = scmp.gt.s32.totalorder %s71, 16
    %p75 = pnand %p73, %p74
    %p76 = pneg %p75
    // Predicated region
    $region22: #{tpu_custom_call.1} parent=1 // pred_check
      %p77 = pneg %p72
    $region23: #{tpu_custom_call.1} parent=1 // pred_check_branch
      %79 = sbr.rel (%p77) target = $region25
    $region24: #{tpu_custom_call.1} parent=1 // pred_region
      %v80 = vld [vmem:[#allocation4] sm:$0xff]
      %v81 = vld [vmem:[#allocation4 + $0x8] sm:$0xff]
      %v82 = vld [vmem:[#allocation7] sm:$0xff]
      %v83 = vld [vmem:[#allocation7 + $0x8] sm:$0xff]
      %v84 = vsub.f32 %v80, %v82
      %v85 = vsub.f32 %v81, %v83
      %v86 = vld [vmem:[#allocation2] sm:$0xff]
      %v87 = vmul.f32 %v84, %v84
      %v88 = vmul.f32 %v85, %v85
      %v89 = vadd.f32 %v87, %v88
      %v90 = vadd.f32 %v86, %v89
      %91 = vst [vmem:[#allocation2] sm:$0xff] %v90
      %v92 = vld [vmem:[#allocation3] sm:$0xff]
      %v93 = vand.u32 2147483647, %v84
      %v94 = vand.u32 2147483647, %v85
      %v95 = vadd.f32 %v93, %v94
      %v96 = vadd.f32 %v92, %v95
      %97 = vst [vmem:[#allocation3] sm:$0xff] %v96
    $region25: #{tpu_custom_call.1} parent=1 // pred_fallthru
      _
    // Predicated region
    $region26: #{tpu_custom_call.1} parent=1 // pred_check
      _
    $region27: #{tpu_custom_call.1} parent=1 // pred_check_branch
      %99 = sbr.rel (%p75) target = $region29
    $region28: #{tpu_custom_call.1} parent=1 // pred_region
      %v100 = vlaneseq
      %v101 = vshrl.u32 %v100, 7
      %v102 = vadd.s32 %v101, 8
      %v103 = vstv %s70
      %v104 = vadd.s32 %v103, %v101
      %v105 = vadd.s32 %v103, %v102
      %vm106 = vcmp.lt.s32.totalorder %v104, 16
      %vm107 = vcmp.lt.s32.totalorder %v105, 16
      %v108 = vld [vmem:[#allocation4] sm:$0xff]
      %v109 = vld [vmem:[#allocation4 + $0x8] sm:$0xff]
      %v110 = vld [vmem:[#allocation7] sm:$0xff]
      %v111 = vld [vmem:[#allocation7 + $0x8] sm:$0xff]
      %v112 = vsub.f32 %v108, %v110
      %v113 = vsub.f32 %v109, %v111
      %v114 = vsel %vm106, %v112, 0.0
      %v115 = vsel %vm107, %v113, 0.0
      %v116 = vld [vmem:[#allocation2] sm:$0xff]
      %v117 = vmul.f32 %v114, %v114
      %v118 = vmul.f32 %v115, %v115
      %v119 = vadd.f32 %v117, %v118
      %v120 = vadd.f32 %v116, %v119
      %121 = vst [vmem:[#allocation2] sm:$0xff] %v120
      %v122 = vld [vmem:[#allocation3] sm:$0xff]
      %v123 = vand.u32 2147483647, %v114
      %v124 = vand.u32 2147483647, %v115
      %v125 = vadd.f32 %v123, %v124
      %v126 = vadd.f32 %v122, %v125
      %127 = vst [vmem:[#allocation3] sm:$0xff] %v126
    $region29: #{tpu_custom_call.1} parent=1 // pred_fallthru
      _
    // Predicated region
    $region30: #{tpu_custom_call.1} parent=1 // pred_check
      %p128 = pneg %p63
    $region31: #{tpu_custom_call.1} parent=1 // pred_check_branch
      %130 = sbr.rel (%p128) target = $region33
    $region32: #{tpu_custom_call.1} parent=1 // pred_region
      %v131 = vld [vmem:[#allocation2] sm:$0xff]
      %v132 = vrot.slane %v131, 4
      %v133 = vadd.f32 %v131, %v132
      %v134 = vrot.slane %v133, 2
      %v135 = vadd.f32 %v133, %v134
      %v136 = vrot.slane %v135, 1
      %v137 = vadd.f32 %v135, %v136
      %138 = vst [vmem:[#allocation9] sm:$0x1] %v137
      %v139 = vld [vmem:[#allocation3] sm:$0xff]
      %v140 = vrot.slane %v139, 4
      %v141 = vadd.f32 %v139, %v140
      %v142 = vrot.slane %v141, 2
      %v143 = vadd.f32 %v141, %v142
      %v144 = vrot.slane %v143, 1
      %v145 = vadd.f32 %v143, %v144
      %146 = vst [vmem:[#allocation10] sm:$0x1] %v145
    $region33: #{tpu_custom_call.1} parent=1 // pred_fallthru
      _
    // Predicated region
    $region34: #{tpu_custom_call.1} parent=1 // pred_check
      _
    $region35: #{tpu_custom_call.1} parent=1 // pred_check_branch
      %148 = sbr.rel (0) target = $region37
    $region36: #{tpu_custom_call.1} parent=1 // pred_region
      %s150 = ssub.s32 16, 16
      %151 = vsyncadd [#allocation6], %s150
      %s153 = sshll.u32 [#allocation9], 4
      %s154 = int_to_ptr.vmem [resolvable:$true] %s153
      %156 = dma.vmem_to_hbm [thread:$0]  %s154, 16, %s2, [#allocation6]
    $region37: #{tpu_custom_call.1} parent=1 // pred_fallthru
      _
    // Predicated region
    $region38: #{tpu_custom_call.1} parent=1 // pred_check
      _
    $region39: #{tpu_custom_call.1} parent=1 // pred_check_branch
      %158 = sbr.rel (0) target = $region41
    $region40: #{tpu_custom_call.1} parent=1 // pred_region
      %s160 = ssub.s32 16, 16
      %161 = vsyncadd [#allocation11], %s160
      %s163 = sshll.u32 [#allocation10], 4
      %s164 = int_to_ptr.vmem [resolvable:$true] %s163
      %166 = dma.vmem_to_hbm [thread:$0]  %s164, 16, %s3, [#allocation11]
    $region41: #{tpu_custom_call.1} parent=1 // pred_fallthru
      _
    // Predicated region
    $region42: #{tpu_custom_call.1} parent=1 // pred_check
      _
    $region43: #{tpu_custom_call.1} parent=1 // pred_check_branch
      %168 = sbr.rel (0) target = $region45
    $region44: #{tpu_custom_call.1} parent=1 // pred_region
      %169 = dma.done [#allocation6], 16
    $region45: #{tpu_custom_call.1} parent=1 // pred_fallthru
      _
    // Predicated region
    $region46: #{tpu_custom_call.1} parent=1 // pred_check
      _
    $region47: #{tpu_custom_call.1} parent=1 // pred_check_branch
      %171 = sbr.rel (0) target = $region49
    $region48: #{tpu_custom_call.1} parent=1 // pred_region
      %172 = dma.done [#allocation11], 16
    $region49: #{tpu_custom_call.1} parent=1 // pred_fallthru
      _
    %173 = vsyncpa [#allocation5], 1
    %174 = vsyncpa [#allocation8], 1
    %175 = vsyncpa [#allocation6], 1
    %176 = vsyncpa [#allocation11], 1

</llo_original>
